<compile_context>
chip_gen: v7x
topology: tpu7x:2x2x1
jax: 0.10.0
libtpu: 0.0.40
codegen_flags: <defaults>
</compile_context>

<pallas_src>
import functools

import jax
import jax.numpy as jnp
from jax.experimental import pallas as pl
from jax.experimental.pallas import tpu as pltpu


def mlp_kernel(x_ref, w1_ref, b1_ref, w2t_ref, b2_ref, o_ref):
    # x_ref:   (2, TB)   w1_ref: (16, 2)   b1_ref: (16, 1)
    # w2t_ref: (16, 2)   b2_ref: (2, 1)    o_ref:  (2, TB)
    x = x_ref[...].astype(jnp.float32)
    w1 = w1_ref[...]

    # Layer 1: h[j,:] = w1[j,0]*x[0,:] + w1[j,1]*x[1,:] + b1[j]  (VPU broadcast FMAs)
    h = w1[:, 0:1] * x[0:1, :] + w1[:, 1:2] * x[1:2, :] + b1_ref[...]   # (16, TB)
    h = jax.nn.sigmoid(h)

    # Layer 2: y[j,:] = sum_k w2[j,k]*h[k,:] + b2[j]  (sublane reduce on XLU, no MXU)
    w2t = w2t_ref[...]                                     # (16, 2) == w2.T
    b2 = b2_ref[...]                                       # (2, 1)
    y0 = jnp.sum(h * w2t[:, 0:1], axis=0, keepdims=True)   # (1, TB)
    y1 = jnp.sum(h * w2t[:, 1:2], axis=0, keepdims=True)   # (1, TB)
    o_ref[0:1, :] = (y0 + b2[0:1, :]).astype(o_ref.dtype)
    o_ref[1:2, :] = (y1 + b2[1:2, :]).astype(o_ref.dtype)


@functools.partial(jax.jit, static_argnames=("tile_b",))
def mlp_forward(x, w1, b1, w2, b2, *, tile_b=1024):
    """x: (B, 2); w1: (16, 2); b1: (16,); w2: (2, 16); b2: (2,) — PyTorch layout."""
    B = x.shape[0]

    # Wrapper-side layout plumbing: feature-major, batch padded to a lane-dense
    # multiple of 128 and of the tile, so blocks obey (8,128) and stores stay unmasked.
    tb = min(tile_b, pl.cdiv(B, 128) * 128)
    b_pad = pl.cdiv(B, tb) * tb
    xt = jnp.pad(x.T, ((0, 0), (0, b_pad - B)))            # (2, b_pad)

    w2t = w2.T                                             # (16, 2)
    b1c = b1.reshape(16, 1)
    b2c = b2.reshape(2, 1)

    resident = lambda shape: pl.BlockSpec(shape, lambda i: (0,) * len(shape))

    cost = pl.CostEstimate(
        flops=68 * b_pad,                # two tiny GEMVs + pointwise work per row
        transcendentals=16 * b_pad,      # exp inside sigmoid
        bytes_accessed=16 * b_pad + 4 * (32 + 16 + 32 + 2),
    )

    out_fm = pl.pallas_call(
        mlp_kernel,
        out_shape=jax.ShapeDtypeStruct((2, b_pad), x.dtype),
        grid=(b_pad // tb,),
        in_specs=[
            pl.BlockSpec((2, tb), lambda i: (0, i)),       # x tile (lane-dense)
            resident((16, 2)),                             # w1
            resident((16, 1)),                             # b1
            resident((16, 2)),                             # w2.T
            resident((2, 1)),                              # b2
        ],
        out_specs=pl.BlockSpec((2, tb), lambda i: (0, i)),
        compiler_params=pltpu.CompilerParams(
            dimension_semantics=("parallel",),
            vmem_limit_bytes=16 * 1024 * 1024,
        ),
        cost_estimate=cost,
    )(xt, w1, b1c, w2t, b2c)

    return out_fm[:, :B].T                                 # back to (B, 2)


def init_params(key):
    """Deterministic init mirroring torch.nn.Linear default (U[-1/sqrt(fan_in), +])."""
    k1, k2, k3, k4 = jax.random.split(key, 4)
    lim1 = 1.0 / jnp.sqrt(2.0)   # fan_in = 2
    lim2 = 1.0 / jnp.sqrt(16.0)  # fan_in = 16
    w1 = jax.random.uniform(k1, (16, 2), jnp.float32, -lim1, lim1)
    b1 = jax.random.uniform(k2, (16,), jnp.float32, -lim1, lim1)
    w2 = jax.random.uniform(k3, (2, 16), jnp.float32, -lim2, lim2)
    b2 = jax.random.uniform(k4, (2,), jnp.float32, -lim2, lim2)
    return w1, b1, w2, b2


if __name__ == "__main__":
    key = jax.random.PRNGKey(0)
    kx, kp = jax.random.split(key)
    B = 8
    x = jax.random.normal(kx, (B, 2), jnp.float32)
    w1, b1, w2, b2 = init_params(kp)

    out = mlp_forward(x, w1, b1, w2, b2)
    jax.block_until_ready(out)

    # Reference check in plain JAX (same math as the PyTorch module).
    ref = jax.nn.sigmoid(x @ w1.T + b1) @ w2.T + b2
    assert out.shape == (B, 2)
    assert jnp.allclose(out, ref, atol=1e-5, rtol=1e-5), float(jnp.max(jnp.abs(out - ref)))

    print("KERNEL_OK")
</pallas_src>

<mosaic_0001>
module attributes {stable_mosaic.version = 11 : i64} {
  func.func @mlp_kernel(%arg0: i32, %arg1: memref<2x128xf32, #tpu.memory_space<vmem>>, %arg2: memref<16x2xf32, #tpu.memory_space<vmem>>, %arg3: memref<16x1xf32, #tpu.memory_space<vmem>>, %arg4: memref<16x2xf32, #tpu.memory_space<vmem>>, %arg5: memref<2x1xf32, #tpu.memory_space<vmem>>, %arg6: memref<2x128xf32, #tpu.memory_space<vmem>>) attributes {dimension_semantics = [#tpu.dimension_semantics<parallel>], iteration_bounds = array<i64: 1>, scalar_prefetch = 0 : i64, scratch_operands = 0 : i64, tpu.core_type = #tpu.core_type<tc>, window_params = [{transform_indices = @transform_0, window_bounds = array<i64: 2, 128>}, {pipeline_mode = #tpu.pipeline_mode<synchronous>, transform_indices = @transform_1, window_bounds = array<i64: 16, 2>}, {pipeline_mode = #tpu.pipeline_mode<synchronous>, transform_indices = @transform_2, window_bounds = array<i64: 16, 1>}, {pipeline_mode = #tpu.pipeline_mode<synchronous>, transform_indices = @transform_3, window_bounds = array<i64: 16, 2>}, {pipeline_mode = #tpu.pipeline_mode<synchronous>, transform_indices = @transform_4, window_bounds = array<i64: 2, 1>}, {transform_indices = @transform_5, window_bounds = array<i64: 2, 128>}]} {
    %c0 = arith.constant 0 : index
    %c0_0 = arith.constant 0 : index
    %0 = vector.load %arg1[%c0, %c0_0] : memref<2x128xf32, #tpu.memory_space<vmem>>, vector<2x128xf32>
    %c0_1 = arith.constant 0 : index
    %c0_2 = arith.constant 0 : index
    %1 = vector.load %arg2[%c0_1, %c0_2] : memref<16x2xf32, #tpu.memory_space<vmem>>, vector<16x2xf32>
    %2 = vector.extract_strided_slice %1 {offsets = [0, 0], sizes = [16, 1], strides = [1, 1]} : vector<16x2xf32> to vector<16x1xf32>
    %3 = vector.extract_strided_slice %0 {offsets = [0, 0], sizes = [1, 128], strides = [1, 1]} : vector<2x128xf32> to vector<1x128xf32>
    %4 = vector.broadcast %2 : vector<16x1xf32> to vector<16x128xf32>
    %5 = vector.broadcast %3 : vector<1x128xf32> to vector<16x128xf32>
    %6 = arith.mulf %4, %5 : vector<16x128xf32>
    %7 = vector.extract_strided_slice %1 {offsets = [0, 1], sizes = [16, 1], strides = [1, 1]} : vector<16x2xf32> to vector<16x1xf32>
    %8 = vector.extract_strided_slice %0 {offsets = [1, 0], sizes = [1, 128], strides = [1, 1]} : vector<2x128xf32> to vector<1x128xf32>
    %9 = vector.broadcast %7 : vector<16x1xf32> to vector<16x128xf32>
    %10 = vector.broadcast %8 : vector<1x128xf32> to vector<16x128xf32>
    %11 = arith.mulf %9, %10 : vector<16x128xf32>
    %12 = arith.addf %6, %11 : vector<16x128xf32>
    %c0_3 = arith.constant 0 : index
    %c0_4 = arith.constant 0 : index
    %13 = vector.load %arg3[%c0_3, %c0_4] : memref<16x1xf32, #tpu.memory_space<vmem>>, vector<16x1xf32>
    %14 = vector.broadcast %13 : vector<16x1xf32> to vector<16x128xf32>
    %15 = arith.addf %12, %14 : vector<16x128xf32>
    %16 = arith.negf %15 : vector<16x128xf32>
    %17 = math.exp %16 : vector<16x128xf32>
    %cst = arith.constant 1.000000e+00 : f32
    %18 = vector.broadcast %cst : f32 to vector<16x128xf32>
    %19 = arith.addf %18, %17 : vector<16x128xf32>
    %20 = arith.divf %18, %19 : vector<16x128xf32>
    %c0_5 = arith.constant 0 : index
    %c0_6 = arith.constant 0 : index
    %21 = vector.load %arg4[%c0_5, %c0_6] : memref<16x2xf32, #tpu.memory_space<vmem>>, vector<16x2xf32>
    %c0_7 = arith.constant 0 : index
    %c0_8 = arith.constant 0 : index
    %22 = vector.load %arg5[%c0_7, %c0_8] : memref<2x1xf32, #tpu.memory_space<vmem>>, vector<2x1xf32>
    %23 = vector.extract_strided_slice %21 {offsets = [0, 0], sizes = [16, 1], strides = [1, 1]} : vector<16x2xf32> to vector<16x1xf32>
    %24 = vector.broadcast %23 : vector<16x1xf32> to vector<16x128xf32>
    %25 = arith.mulf %20, %24 : vector<16x128xf32>
    %cst_9 = arith.constant dense<0.000000e+00> : vector<128xf32>
    %26 = vector.multi_reduction <add>, %25, %cst_9 [0] : vector<16x128xf32> to vector<128xf32>
    %27 = vector.shape_cast %26 : vector<128xf32> to vector<1x128xf32>
    %28 = vector.extract_strided_slice %21 {offsets = [0, 1], sizes = [16, 1], strides = [1, 1]} : vector<16x2xf32> to vector<16x1xf32>
    %29 = vector.broadcast %28 : vector<16x1xf32> to vector<16x128xf32>
    %30 = arith.mulf %20, %29 : vector<16x128xf32>
    %cst_10 = arith.constant dense<0.000000e+00> : vector<128xf32>
    %31 = vector.multi_reduction <add>, %30, %cst_10 [0] : vector<16x128xf32> to vector<128xf32>
    %32 = vector.shape_cast %31 : vector<128xf32> to vector<1x128xf32>
    %33 = vector.extract_strided_slice %22 {offsets = [0, 0], sizes = [1, 1], strides = [1, 1]} : vector<2x1xf32> to vector<1x1xf32>
    %34 = vector.broadcast %33 : vector<1x1xf32> to vector<1x128xf32>
    %35 = arith.addf %27, %34 : vector<1x128xf32>
    %c0_11 = arith.constant 0 : index
    %c0_12 = arith.constant 0 : index
    %36 = vector.load %arg6[%c0_11, %c0_12] : memref<2x128xf32, #tpu.memory_space<vmem>>, vector<1x128xf32>
    tpu.vector_store %arg6[%c0_11, %c0_12], %35 {strides = array<i32>} : memref<2x128xf32, #tpu.memory_space<vmem>>, vector<1x128xf32>,
    %37 = vector.extract_strided_slice %22 {offsets = [1, 0], sizes = [1, 1], strides = [1, 1]} : vector<2x1xf32> to vector<1x1xf32>
    %38 = vector.broadcast %37 : vector<1x1xf32> to vector<1x128xf32>
    %39 = arith.addf %32, %38 : vector<1x128xf32>
    %c1 = arith.constant 1 : index
    %c0_13 = arith.constant 0 : index
    %40 = vector.load %arg6[%c1, %c0_13] : memref<2x128xf32, #tpu.memory_space<vmem>>, vector<1x128xf32>
    tpu.vector_store %arg6[%c1, %c0_13], %39 {strides = array<i32>} : memref<2x128xf32, #tpu.memory_space<vmem>>, vector<1x128xf32>,
    return
  }
  func.func @transform_0(%arg0: i32) -> (i32, i32) {
    %c0_i32 = arith.constant 0 : i32
    %c0_i32_0 = arith.constant 0 : i32
    return %c0_i32, %arg0 : i32, i32
  }
  func.func @transform_1(%arg0: i32) -> (i32, i32) {
    %c0_i32 = arith.constant 0 : i32
    %c0_i32_0 = arith.constant 0 : i32
    %c0_i32_1 = arith.constant 0 : i32
    return %c0_i32, %c0_i32_0 : i32, i32
  }
  func.func @transform_2(%arg0: i32) -> (i32, i32) {
    %c0_i32 = arith.constant 0 : i32
    %c0_i32_0 = arith.constant 0 : i32
    %c0_i32_1 = arith.constant 0 : i32
    return %c0_i32, %c0_i32_0 : i32, i32
  }
  func.func @transform_3(%arg0: i32) -> (i32, i32) {
    %c0_i32 = arith.constant 0 : i32
    %c0_i32_0 = arith.constant 0 : i32
    %c0_i32_1 = arith.constant 0 : i32
    return %c0_i32, %c0_i32_0 : i32, i32
  }
  func.func @transform_4(%arg0: i32) -> (i32, i32) {
    %c0_i32 = arith.constant 0 : i32
    %c0_i32_0 = arith.constant 0 : i32
    %c0_i32_1 = arith.constant 0 : i32
    return %c0_i32, %c0_i32_0 : i32, i32
  }
  func.func @transform_5(%arg0: i32) -> (i32, i32) {
    %c0_i32 = arith.constant 0 : i32
    %c0_i32_0 = arith.constant 0 : i32
    return %c0_i32, %arg0 : i32, i32
  }
}

</mosaic_0001>

<llo_original>
// kernel: mlp_forward.1
$region0: #{mlp_forward.1}
  #allocation0 [shape = 'u32[]', space=smem, size = 0x4, offset = 0x4, fixed_abs, tag = 'smem constant byte address 0x4 - core index']
  #allocation1 [shape = 'u32[144,128]{1,0:T(1,128)}', space=vmem, size = 0x12000, scoped, tag = 'internal scratch']
  %s0 = inlined_call_operand.vmem [shape: f32[2,128], index: 0, kind: input, shape index: {}]
  %s1 = inlined_call_operand.vmem [shape: f32[16,2], index: 1, kind: input, shape index: {}]
  %s2 = inlined_call_operand.vmem [shape: f32[16,1], index: 2, kind: input, shape index: {}]
  %s3 = inlined_call_operand.vmem [shape: f32[16,2], index: 3, kind: input, shape index: {}]
  %s4 = inlined_call_operand.vmem [shape: f32[2,1], index: 4, kind: input, shape index: {}]
  %s5 = inlined_call_operand.vmem [shape: f32[2,128], index: 5, kind: output, shape index: {}]
  %s6 = sld [smem:[#allocation0]]
  $region30: #{mlp_forward.1} parent=0
    _
  %s8 = ssub.s32 1, %s6
  %s9 = scalar_select 0, %s8, %s6
  // Predicated region
  $region2: #{mlp_forward.1} parent=0 // pred_check
    _
  $region3: #{mlp_forward.1} parent=0 // pred_check_branch
    %11 = sbr.rel (0) target = $region5
  $region4: #{mlp_forward.1} parent=0 // pred_region
    _
  $region5: #{mlp_forward.1} parent=0 // pred_fallthru
    _
  // Predicated region
  $region6: #{mlp_forward.1} parent=0 // pred_check
    _
  $region7: #{mlp_forward.1} parent=0 // pred_check_branch
    %13 = sbr.rel (0) target = $region9
  $region8: #{mlp_forward.1} parent=0 // pred_region
    _
  $region9: #{mlp_forward.1} parent=0 // pred_fallthru
    _
  // Predicated region
  $region10: #{mlp_forward.1} parent=0 // pred_check
    _
  $region11: #{mlp_forward.1} parent=0 // pred_check_branch
    %15 = sbr.rel (0) target = $region13
  $region12: #{mlp_forward.1} parent=0 // pred_region
    _
  $region13: #{mlp_forward.1} parent=0 // pred_fallthru
    _
  // Predicated region
  $region14: #{mlp_forward.1} parent=0 // pred_check
    _
  $region15: #{mlp_forward.1} parent=0 // pred_check_branch
    %17 = sbr.rel (0) target = $region17
  $region16: #{mlp_forward.1} parent=0 // pred_region
    _
  $region17: #{mlp_forward.1} parent=0 // pred_fallthru
    _
  // Predicated region
  $region18: #{mlp_forward.1} parent=0 // pred_check
    _
  $region19: #{mlp_forward.1} parent=0 // pred_check_branch
    %19 = sbr.rel (0) target = $region21
  $region20: #{mlp_forward.1} parent=0 // pred_region
    _
  $region21: #{mlp_forward.1} parent=0 // pred_fallthru
    _
  %v20 = vld [vmem:[%s0] sm:$0x3]
  %v21 = vld [vmem:[%s1] sm:$0xff]
  %v22 = vld [vmem:[%s1 + $0x8] sm:$0xff]
  %24 = vset.pattern.permute.xlu0 0
  %25 = vperm.xlu0 %24, %v21
  %v26 = vpop.permute.xlu0 %25
  %29 = vset.pattern.permute.xlu0 0
  %30 = vperm.xlu0 %29, %v22
  %v31 = vpop.permute.xlu0 %30
  %v33 = vlaneseq
  %v34 = vshrl.u32 %v33, 7
  %v35 = vsub.s32 0, %v34
  %v36 = vrot.slane %v20, %v35
  %v37 = vmul.f32 %v26, %v36
  %v38 = vmul.f32 %v31, %v36
  %39 = vset.pattern.permute.xlu0 1
  %40 = vperm.xlu0 %39, %v21
  %v41 = vpop.permute.xlu0 %40
  %43 = vset.pattern.permute.xlu0 1
  %44 = vperm.xlu0 %43, %v22
  %v45 = vpop.permute.xlu0 %44
  %v47 = vlaneseq
  %v48 = vshrl.u32 %v47, 7
  %v49 = vsub.s32 1, %v48
  %v50 = vrot.slane %v20, %v49
  %v51 = vmul.f32 %v41, %v50
  %v52 = vmul.f32 %v45, %v50
  %v53 = vadd.f32 %v37, %v51
  %v54 = vadd.f32 %v38, %v52
  %v55 = vld [vmem:[%s2] sm:$0xff]
  %v56 = vld [vmem:[%s2 + $0x8] sm:$0xff]
  %58 = vset.pattern.permute.xlu0 0
  %59 = vperm.xlu0 %58, %v55
  %v60 = vpop.permute.xlu0 %59
  %63 = vset.pattern.permute.xlu0 0
  %64 = vperm.xlu0 %63, %v56
  %v65 = vpop.permute.xlu0 %64
  %v67 = vadd.f32 %v53, %v60
  %v68 = vadd.f32 %v54, %v65
  %v69 = vxor.u32 %v67, 2147483648
  %v70 = vxor.u32 %v68, 2147483648
  %v71 = vmul.f32 %v69, 1.442695
  %v72 = vpow.pop %v71
  %v73 = vmul.f32 %v70, 1.442695
  %v74 = vpow.pop %v73
  %v75 = vadd.f32 %v72, 1.0
  %v76 = vadd.f32 %v74, 1.0
  %v77 = vrcp.pop %v75
  %v78 = vmul.f32 1.0, %v77
  %v79 = vrcp.pop %v76
  %v80 = vmul.f32 1.0, %v79
  %v81 = vld [vmem:[%s3] sm:$0xff]
  %v82 = vld [vmem:[%s3 + $0x8] sm:$0xff]
  %v83 = vld [vmem:[%s4] sm:$0x3]
  %85 = vset.pattern.permute.xlu0 0
  %86 = vperm.xlu0 %85, %v81
  %v87 = vpop.permute.xlu0 %86
  %90 = vset.pattern.permute.xlu0 0
  %91 = vperm.xlu0 %90, %v82
  %v92 = vpop.permute.xlu0 %91
  %v94 = vmul.f32 %v78, %v87
  %v95 = vmul.f32 %v80, %v92
  %v96 = vadd.f32 %v94, %v95
  %v97 = vrot.slane %v96, 4
  %v98 = vadd.f32 %v96, %v97
  %v99 = vrot.slane %v98, 2
  %v100 = vadd.f32 %v98, %v99
  %v101 = vrot.slane %v100, 1
  %v102 = vadd.f32 %v100, %v101
  %103 = vset.pattern.permute.xlu0 1
  %104 = vperm.xlu0 %103, %v81
  %v105 = vpop.permute.xlu0 %104
  %107 = vset.pattern.permute.xlu0 1
  %108 = vperm.xlu0 %107, %v82
  %v109 = vpop.permute.xlu0 %108
  %v111 = vmul.f32 %v78, %v105
  %v112 = vmul.f32 %v80, %v109
  %v113 = vadd.f32 %v111, %v112
  %v114 = vrot.slane %v113, 4
  %v115 = vadd.f32 %v113, %v114
  %v116 = vrot.slane %v115, 2
  %v117 = vadd.f32 %v115, %v116
  %v118 = vrot.slane %v117, 1
  %v119 = vadd.f32 %v117, %v118
  %121 = vset.pattern.permute.xlu0 0
  %122 = vperm.xlu0 %121, %v83
  %v123 = vpop.permute.xlu0 %122
  %v125 = vadd.f32 %v102, %v123
  %126 = vst [vmem:[%s5] sm:$0x1] %v125
  %v127 = vadd.f32 %v119, %v123
  %128 = vst [vmem:[%s5] sm:$0x2] %v127
  // Predicated region
  $region22: #{mlp_forward.1} parent=0 // pred_check
    _
  $region23: #{mlp_forward.1} parent=0 // pred_check_branch
    %130 = sbr.rel (0) target = $region25
  $region24: #{mlp_forward.1} parent=0 // pred_region
    _
  $region25: #{mlp_forward.1} parent=0 // pred_fallthru
    _
  // Predicated region
  $region26: #{mlp_forward.1} parent=0 // pred_check
    _
  $region27: #{mlp_forward.1} parent=0 // pred_check_branch
    %132 = sbr.rel (0) target = $region29
  $region28: #{mlp_forward.1} parent=0 // pred_region
    _
  $region29: #{mlp_forward.1} parent=0 // pred_fallthru
    _

</llo_original>
